<compile_context>
chip_gen: v5e
topology: v5e:2x2
jax: 0.10.0
libtpu: 0.0.40
codegen_flags: <defaults>
</compile_context>

<pallas_src>
import functools

import jax
import jax.numpy as jnp
from jax.experimental import pallas as pl
from jax.experimental.pallas import tpu as pltpu


def _round_up(x, m):
    return (x + m - 1) // m * m


def _choose_batch_tile(B, block_b=1024):
    """Pick a batch tile: minimize padding, keep MXU M>=256 for big B,
    and guarantee >=2 grid steps (v7x megacore) when B is large enough."""
    block_b = max(8, _round_up(block_b, 8))
    if B <= 256:
        return min(_round_up(B, 8), block_b)
    cands = [t for t in (256, 512, 1024) if t <= block_b] or [block_b]
    # minimize padded rows; prefer the larger tile on ties
    tb = min(cands, key=lambda t: (_round_up(B, t) - B, -t))
    # v7x: if everything fits in one tile, split it so both TensorCores get work.
    if _round_up(B, tb) == tb and tb > 256:
        tb //= 2
    return tb


# -----------------------------------------------------------------------------
# Parameter packing (call once per parameter update, reuse across forwards)
# -----------------------------------------------------------------------------
def pack_actor_params(w1, b1, w2, b2, w3, b3):
    """Pack the three Linear layers into one bf16 weight slab + one f32 bias
    slab with 128-padded feature dims.  The softmax padding mask is baked into
    the pi bias row (padded lanes get -1e30)."""
    D, H1 = w1.shape
    H2 = w2.shape[1]
    A = w3.shape[1]
    d_p, h1_p, h2_p, a_p = (_round_up(v, 128) for v in (D, H1, H2, A))
    wcols = max(h1_p, h2_p, a_p)

    w1p = jnp.zeros((d_p, wcols), jnp.bfloat16).at[:D, :H1].set(w1.astype(jnp.bfloat16))
    w2p = jnp.zeros((h1_p, wcols), jnp.bfloat16).at[:H1, :H2].set(w2.astype(jnp.bfloat16))
    w3p = jnp.zeros((h2_p, wcols), jnp.bfloat16).at[:H2, :A].set(w3.astype(jnp.bfloat16))
    w_slab = jnp.concatenate([w1p, w2p, w3p], axis=0)

    b_slab = jnp.zeros((8, wcols), jnp.float32)
    b_slab = b_slab.at[0, :H1].set(b1.reshape(-1))
    b_slab = b_slab.at[1, :H2].set(b2.reshape(-1))
    # pi bias row: padded action lanes carry a huge negative logit so the
    # in-kernel softmax ignores them (no iota/where needed in the kernel).
    b_slab = b_slab.at[2, :].set(jnp.full((wcols,), -1e30, jnp.float32))
    b_slab = b_slab.at[2, :A].set(b3.reshape(-1))

    meta = dict(D=D, H1=H1, H2=H2, A=A, d_p=d_p, h1_p=h1_p, h2_p=h2_p, a_p=a_p)
    return w_slab, b_slab, meta


# -----------------------------------------------------------------------------
# Kernel
# -----------------------------------------------------------------------------
def actor_kernel(x_ref, w_ref, b_ref, o_ref, *, d_p, h1_p, h2_p, a_p):
    """One batch tile of softmax(relu(relu(x@W1+b1)@W2+b2)@W3+b3)."""
    x = x_ref[...]                                        # (TB, d_p) bf16

    # Static, tile-aligned views into the packed weight / bias slabs.
    w1 = w_ref[0:d_p, 0:h1_p]
    w2 = w_ref[d_p:d_p + h1_p, 0:h2_p]
    w3 = w_ref[d_p + h1_p:d_p + h1_p + h2_p, 0:a_p]
    b1 = b_ref[0:1, 0:h1_p]
    b2 = b_ref[1:2, 0:h2_p]
    b3 = b_ref[2:3, 0:a_p]   # padded lanes already hold -1e30 (mask baked in)

    # fc1 + ReLU  (bf16 MXU operands, f32 accumulate; elementwise in f32)
    h1 = jnp.maximum(jnp.dot(x, w1, preferred_element_type=jnp.float32) + b1, 0.0)

    # fc2 + ReLU
    h2 = jnp.maximum(
        jnp.dot(h1.astype(jnp.bfloat16), w2, preferred_element_type=jnp.float32) + b2, 0.0)

    # pi head
    logits = jnp.dot(h2.astype(jnp.bfloat16), w3, preferred_element_type=jnp.float32) + b3

    # Numerically stable softmax.  Exact division (not the approximate EUP
    # reciprocal) so every row sums to 1.0 to f32 precision -- the policy
    # probabilities feed sampling / log-probs downstream.
    mx = jnp.max(logits, axis=-1, keepdims=True)
    e = jnp.exp(logits - mx)
    denom = jnp.sum(e, axis=-1, keepdims=True)
    o_ref[...] = (e / denom).astype(o_ref.dtype)


# -----------------------------------------------------------------------------
# Forward wrapper
# -----------------------------------------------------------------------------
def actor_forward(state, packed, *, block_b=1024, out_dtype=jnp.float32):
    """state: (B, input_dims) f32; packed = pack_actor_params(...)."""
    w_slab, b_slab, meta = packed
    B, D = state.shape
    assert D == meta["D"], "state feature dim does not match packed params"
    d_p, h1_p, h2_p, a_p = meta["d_p"], meta["h1_p"], meta["h2_p"], meta["a_p"]
    A = meta["A"]

    tb = _choose_batch_tile(B, block_b)
    b_p = _round_up(B, tb)

    # Padded, bf16 input slab (lane-dense).
    x_p = jnp.zeros((b_p, d_p), jnp.bfloat16).at[:B, :D].set(state.astype(jnp.bfloat16))

    kernel = functools.partial(actor_kernel, d_p=d_p, h1_p=h1_p, h2_p=h2_p, a_p=a_p)

    out = pl.pallas_call(
        kernel,
        out_shape=jax.ShapeDtypeStruct((b_p, a_p), out_dtype),
        grid=(b_p // tb,),
        in_specs=[
            pl.BlockSpec((tb, d_p), lambda i: (i, 0)),        # batch tile of state
            pl.BlockSpec(w_slab.shape, lambda i: (0, 0)),     # weights: VMEM-resident
            pl.BlockSpec(b_slab.shape, lambda i: (0, 0)),     # biases:  VMEM-resident
        ],
        out_specs=pl.BlockSpec((tb, a_p), lambda i: (i, 0)),  # lane-dense output
        compiler_params=pltpu.CompilerParams(
            dimension_semantics=("parallel",),
        ),
    )(x_p, w_slab, b_slab)

    return out[:B, :A]


# -----------------------------------------------------------------------------
# Init / reference / test
# -----------------------------------------------------------------------------
def init_linear_params(key, in_dim, out_dim):
    # Mimic torch.nn.Linear default init: U(-1/sqrt(in), 1/sqrt(in)).
    kw, kb = jax.random.split(key)
    bound = 1.0 / jnp.sqrt(jnp.float32(in_dim))
    w = jax.random.uniform(kw, (in_dim, out_dim), jnp.float32, -bound, bound)
    b = jax.random.uniform(kb, (1, out_dim), jnp.float32, -bound, bound)
    return w, b


def reference_forward(state, w1, b1, w2, b2, w3, b3):
    # Same math / precision pattern as the kernel (bf16 MXU operands, f32 acc).
    x = state.astype(jnp.bfloat16)
    h1 = jnp.maximum(
        jnp.dot(x, w1.astype(jnp.bfloat16), preferred_element_type=jnp.float32) + b1, 0.0)
    h2 = jnp.maximum(
        jnp.dot(h1.astype(jnp.bfloat16), w2.astype(jnp.bfloat16),
                preferred_element_type=jnp.float32) + b2, 0.0)
    logits = jnp.dot(h2.astype(jnp.bfloat16), w3.astype(jnp.bfloat16),
                     preferred_element_type=jnp.float32) + b3
    return jax.nn.softmax(logits, axis=1)


if __name__ == "__main__":
    # Small shapes consistent with the module's forward: state is [B, input_dims].
    batch = 8
    input_dims = 16
    fc1_dims = 64
    fc2_dims = 64
    n_actions = 8

    key = jax.random.PRNGKey(0)
    k_state, k1, k2, k3 = jax.random.split(key, 4)

    state = jax.random.normal(k_state, (batch, input_dims), jnp.float32)
    w1, b1 = init_linear_params(k1, input_dims, fc1_dims)
    w2, b2 = init_linear_params(k2, fc1_dims, fc2_dims)
    w3, b3 = init_linear_params(k3, fc2_dims, n_actions)

    # Pack once (per parameter update); reuse the slabs across forward calls.
    w_slab, b_slab, meta = pack_actor_params(w1, b1, w2, b2, w3, b3)
    w_slab, b_slab = jax.block_until_ready((w_slab, b_slab))
    packed = (w_slab, b_slab, meta)

    pi = actor_forward(state, packed)
    pi = jax.block_until_ready(pi)

    ref = reference_forward(state, w1, b1, w2, b2, w3, b3)

    assert pi.shape == (batch, n_actions)
    # Exact softmax normalization -> rows sum to 1 at f32 precision.
    assert bool(jnp.allclose(jnp.sum(pi, axis=1), 1.0, atol=1e-4))
    # bf16 matmul operands (f32 accumulate) -> relaxed comparison vs reference.
    assert bool(jnp.allclose(pi, ref, atol=2e-3, rtol=2e-3))

    # TODO(synk): optimizer / checkpoint save-load from the PyTorch module are
    # training & I/O concerns, not part of the forward pass kernel.
    print("KERNEL_OK")
</pallas_src>

<mosaic_0001>
module attributes {stable_mosaic.version = 11 : i64} {
  func.func @actor_kernel(%arg0: i32, %arg1: memref<8x128xbf16, #tpu.memory_space<vmem>>, %arg2: memref<384x128xbf16, #tpu.memory_space<vmem>>, %arg3: memref<8x128xf32, #tpu.memory_space<vmem>>, %arg4: memref<8x128xf32, #tpu.memory_space<vmem>>) attributes {dimension_semantics = [#tpu.dimension_semantics<parallel>], iteration_bounds = array<i64: 1>, scalar_prefetch = 0 : i64, scratch_operands = 0 : i64, tpu.core_type = #tpu.core_type<tc>, window_params = [{transform_indices = @transform_0, window_bounds = array<i64: 8, 128>}, {pipeline_mode = #tpu.pipeline_mode<synchronous>, transform_indices = @transform_1, window_bounds = array<i64: 384, 128>}, {pipeline_mode = #tpu.pipeline_mode<synchronous>, transform_indices = @transform_2, window_bounds = array<i64: 8, 128>}, {transform_indices = @transform_3, window_bounds = array<i64: 8, 128>}]} {
    %c0 = arith.constant 0 : index
    %c0_0 = arith.constant 0 : index
    %0 = vector.load %arg1[%c0, %c0_0] : memref<8x128xbf16, #tpu.memory_space<vmem>>, vector<8x128xbf16>
    %c0_1 = arith.constant 0 : index
    %c0_2 = arith.constant 0 : index
    %1 = vector.load %arg2[%c0_1, %c0_2] : memref<384x128xbf16, #tpu.memory_space<vmem>>, vector<128x128xbf16>
    %c128 = arith.constant 128 : index
    %c0_3 = arith.constant 0 : index
    %2 = vector.load %arg2[%c128, %c0_3] : memref<384x128xbf16, #tpu.memory_space<vmem>>, vector<128x128xbf16>
    %c256 = arith.constant 256 : index
    %c0_4 = arith.constant 0 : index
    %3 = vector.load %arg2[%c256, %c0_4] : memref<384x128xbf16, #tpu.memory_space<vmem>>, vector<128x128xbf16>
    %c0_5 = arith.constant 0 : index
    %c0_6 = arith.constant 0 : index
    %4 = vector.load %arg3[%c0_5, %c0_6] : memref<8x128xf32, #tpu.memory_space<vmem>>, vector<1x128xf32>
    %c1 = arith.constant 1 : index
    %c0_7 = arith.constant 0 : index
    %5 = vector.load %arg3[%c1, %c0_7] : memref<8x128xf32, #tpu.memory_space<vmem>>, vector<1x128xf32>
    %c2 = arith.constant 2 : index
    %c0_8 = arith.constant 0 : index
    %6 = vector.load %arg3[%c2, %c0_8] : memref<8x128xf32, #tpu.memory_space<vmem>>, vector<1x128xf32>
    %cst = arith.constant dense<0.000000e+00> : vector<8x128xf32>
    %7 = tpu.matmul %0, %1, %cst {dimension_numbers = #tpu.dot_dimension_numbers<[1], [0], [0], [1], [0, 0, 1, 1], [], []>} : vector<8x128xbf16>, vector<128x128xbf16>, vector<8x128xf32> -> vector<8x128xf32>
    %8 = vector.broadcast %4 : vector<1x128xf32> to vector<8x128xf32>
    %9 = arith.addf %7, %8 : vector<8x128xf32>
    %cst_9 = arith.constant 0.000000e+00 : f32
    %10 = vector.broadcast %cst_9 : f32 to vector<8x128xf32>
    %11 = arith.maximumf %9, %10 : vector<8x128xf32>
    %12 = arith.truncf %11 : vector<8x128xf32> to vector<8x128xbf16>
    %cst_10 = arith.constant dense<0.000000e+00> : vector<8x128xf32>
    %13 = tpu.matmul %12, %2, %cst_10 {dimension_numbers = #tpu.dot_dimension_numbers<[1], [0], [0], [1], [0, 0, 1, 1], [], []>} : vector<8x128xbf16>, vector<128x128xbf16>, vector<8x128xf32> -> vector<8x128xf32>
    %14 = vector.broadcast %5 : vector<1x128xf32> to vector<8x128xf32>
    %15 = arith.addf %13, %14 : vector<8x128xf32>
    %cst_11 = arith.constant 0.000000e+00 : f32
    %16 = vector.broadcast %cst_11 : f32 to vector<8x128xf32>
    %17 = arith.maximumf %15, %16 : vector<8x128xf32>
    %18 = arith.truncf %17 : vector<8x128xf32> to vector<8x128xbf16>
    %cst_12 = arith.constant dense<0.000000e+00> : vector<8x128xf32>
    %19 = tpu.matmul %18, %3, %cst_12 {dimension_numbers = #tpu.dot_dimension_numbers<[1], [0], [0], [1], [0, 0, 1, 1], [], []>} : vector<8x128xbf16>, vector<128x128xbf16>, vector<8x128xf32> -> vector<8x128xf32>
    %20 = vector.broadcast %6 : vector<1x128xf32> to vector<8x128xf32>
    %21 = arith.addf %19, %20 : vector<8x128xf32>
    %cst_13 = arith.constant dense<0xFF800000> : vector<8xf32>
    %22 = vector.multi_reduction <maximumf>, %21, %cst_13 [1] : vector<8x128xf32> to vector<8xf32>
    %23 = vector.shape_cast %22 : vector<8xf32> to vector<8x1xf32>
    %24 = vector.broadcast %23 : vector<8x1xf32> to vector<8x128xf32>
    %25 = arith.subf %21, %24 : vector<8x128xf32>
    %26 = math.exp %25 : vector<8x128xf32>
    %cst_14 = arith.constant dense<0.000000e+00> : vector<8xf32>
    %27 = vector.multi_reduction <add>, %26, %cst_14 [1] : vector<8x128xf32> to vector<8xf32>
    %28 = vector.shape_cast %27 : vector<8xf32> to vector<8x1xf32>
    %29 = vector.broadcast %28 : vector<8x1xf32> to vector<8x128xf32>
    %30 = arith.divf %26, %29 : vector<8x128xf32>
    %c0_15 = arith.constant 0 : index
    %c0_16 = arith.constant 0 : index
    %31 = vector.load %arg4[%c0_15, %c0_16] : memref<8x128xf32, #tpu.memory_space<vmem>>, vector<8x128xf32>
    tpu.vector_store %arg4[%c0_15, %c0_16], %30 {strides = array<i32>} : memref<8x128xf32, #tpu.memory_space<vmem>>, vector<8x128xf32>,
    return
  }
  func.func @transform_0(%arg0: i32) -> (i32, i32) {
    %c0_i32 = arith.constant 0 : i32
    %c0_i32_0 = arith.constant 0 : i32
    return %arg0, %c0_i32 : i32, i32
  }
  func.func @transform_1(%arg0: i32) -> (i32, i32) {
    %c0_i32 = arith.constant 0 : i32
    %c0_i32_0 = arith.constant 0 : i32
    %c0_i32_1 = arith.constant 0 : i32
    return %c0_i32, %c0_i32_0 : i32, i32
  }
  func.func @transform_2(%arg0: i32) -> (i32, i32) {
    %c0_i32 = arith.constant 0 : i32
    %c0_i32_0 = arith.constant 0 : i32
    %c0_i32_1 = arith.constant 0 : i32
    return %c0_i32, %c0_i32_0 : i32, i32
  }
  func.func @transform_3(%arg0: i32) -> (i32, i32) {
    %c0_i32 = arith.constant 0 : i32
    %c0_i32_0 = arith.constant 0 : i32
    return %arg0, %c0_i32 : i32, i32
  }
}

</mosaic_0001>

<llo_original>
// kernel: tpu_custom_call.1
$region0: #{tpu_custom_call.1}
  #allocation0 [shape = 'u32[]', space=smem, size = 0x4, offset = 0x4, fixed_abs, tag = 'smem constant byte address 0x4 - core index']
  #allocation1 [shape = 'u32[72,128]{1,0:T(1,128)}', space=vmem, size = 0x9000, scoped, tag = 'internal scratch']
  %s0 = inlined_call_operand.hbm [shape: bf16[8,128], index: 0, kind: input, shape index: {}]
  %s1 = inlined_call_operand.hbm [shape: bf16[384,128], index: 1, kind: input, shape index: {}]
  %s2 = inlined_call_operand.hbm [shape: f32[8,128], index: 2, kind: input, shape index: {}]
  %s3 = inlined_call_operand.hbm [shape: f32[8,128], index: 3, kind: output, shape index: {}]
  %s4 = sld [smem:[#allocation0]]
  $region34: #{tpu_custom_call.1} parent=0
    _
  %s6 = ssub.s32 1, %s4
  %s7 = scalar_select 0, %s6, %s4
  $region1: #{tpu_custom_call.1} parent=0
    #allocation2 [shape = 'u8[2048]{0}', space=vmem, size = 0x800, scoped, tag = 'input window, operand 0, single buffered']
    #allocation3 [shape = 's32[1]{0}', space=sflag, size = 0x4, scoped, tag = 'scoped memory for tpu_custom_call.1']
    #allocation4 [shape = 's32[1]{0}', space=sflag, size = 0x4, scoped, tag = 'scoped memory for tpu_custom_call.1']
    #allocation5 [shape = 'u8[98304]{0}', space=vmem, size = 0x18000, scoped, tag = 'input window, operand 1, single buffered']
    #allocation6 [shape = 's32[1]{0}', space=sflag, size = 0x4, scoped, tag = 'scoped memory for tpu_custom_call.1']
    #allocation7 [shape = 'u8[4096]{0}', space=vmem, size = 0x1000, scoped, tag = 'input window, operand 2, single buffered']
    #allocation8 [shape = 'u8[4096]{0}', space=vmem, size = 0x1000, scoped, tag = 'output window, operand 0, single buffered']
    %8 = vsyncpa [#allocation3], 0
    %9 = vsyncpa [#allocation6], 0
    %10 = vsyncpa [#allocation4], 0
    // Predicated region
    $region2: #{tpu_custom_call.1} parent=1 // pred_check
      _
    $region3: #{tpu_custom_call.1} parent=1 // pred_check_branch
      %12 = sbr.rel (0) target = $region5
    $region4: #{tpu_custom_call.1} parent=1 // pred_region
      %14 = vsyncadd [#allocation3], 0
      %s16 = sshll.u32 %s0, 4
      %s17 = int_to_ptr.hbm [resolvable:$true] %s16
      %s18 = sshll.u32 [#allocation2], 4
      %s19 = int_to_ptr.vmem [resolvable:$true] %s18
      %21 = dma.hbm_to_vmem [thread:$0]  %s17, 64, %s19, [#allocation3]
    $region5: #{tpu_custom_call.1} parent=1 // pred_fallthru
      _
    // Predicated region
    $region6: #{tpu_custom_call.1} parent=1 // pred_check
      _
    $region7: #{tpu_custom_call.1} parent=1 // pred_check_branch
      %23 = sbr.rel (0) target = $region9
    $region8: #{tpu_custom_call.1} parent=1 // pred_region
      %25 = vsyncadd [#allocation6], 0
      %s26 = sshll.u32 %s1, 4
      %s27 = int_to_ptr.hbm [resolvable:$true] %s26
      %s28 = sshll.u32 [#allocation5], 4
      %s29 = int_to_ptr.vmem [resolvable:$true] %s28
      %34 = dma.hbm_to_vmem [thread:$0]  %s27, 3072, %s29, [#allocation6], 64, 64, 4
    $region9: #{tpu_custom_call.1} parent=1 // pred_fallthru
      _
    // Predicated region
    $region10: #{tpu_custom_call.1} parent=1 // pred_check
      _
    $region11: #{tpu_custom_call.1} parent=1 // pred_check_branch
      %36 = sbr.rel (0) target = $region13
    $region12: #{tpu_custom_call.1} parent=1 // pred_region
      %38 = vsyncadd [#allocation6], 0
      %s40 = sshll.u32 %s2, 4
      %s41 = int_to_ptr.hbm [resolvable:$true] %s40
      %s42 = sshll.u32 [#allocation7], 4
      %s43 = int_to_ptr.vmem [resolvable:$true] %s42
      %45 = dma.hbm_to_vmem [thread:$0]  %s41, 128, %s43, [#allocation6]
    $region13: #{tpu_custom_call.1} parent=1 // pred_fallthru
      _
    // Predicated region
    $region14: #{tpu_custom_call.1} parent=1 // pred_check
      _
    $region15: #{tpu_custom_call.1} parent=1 // pred_check_branch
      %47 = sbr.rel (0) target = $region17
    $region16: #{tpu_custom_call.1} parent=1 // pred_region
      %49 = dma.done [#allocation3], 64
    $region17: #{tpu_custom_call.1} parent=1 // pred_fallthru
      _
    // Predicated region
    $region18: #{tpu_custom_call.1} parent=1 // pred_check
      _
    $region19: #{tpu_custom_call.1} parent=1 // pred_check_branch
      %51 = sbr.rel (0) target = $region21
    $region20: #{tpu_custom_call.1} parent=1 // pred_region
      %53 = dma.done [#allocation6], 3072
    $region21: #{tpu_custom_call.1} parent=1 // pred_fallthru
      _
    // Predicated region
    $region22: #{tpu_custom_call.1} parent=1 // pred_check
      _
    $region23: #{tpu_custom_call.1} parent=1 // pred_check_branch
      %55 = sbr.rel (0) target = $region25
    $region24: #{tpu_custom_call.1} parent=1 // pred_region
      %57 = dma.done [#allocation6], 128
    $region25: #{tpu_custom_call.1} parent=1 // pred_fallthru
      _
    %v58 = vld [vmem:[#allocation2] sm:$0xf]
    %v59 = vld [vmem:[#allocation5] sm:$0xf]
    %v60 = vld [vmem:[#allocation5 + $0x4] sm:$0xf]
    %v61 = vld [vmem:[#allocation5 + $0x8] sm:$0xf]
    %v62 = vld [vmem:[#allocation5 + $0xc] sm:$0xf]
    %v63 = vld [vmem:[#allocation5 + $0x10] sm:$0xf]
    %v64 = vld [vmem:[#allocation5 + $0x14] sm:$0xf]
    %v65 = vld [vmem:[#allocation5 + $0x18] sm:$0xf]
    %v66 = vld [vmem:[#allocation5 + $0x1c] sm:$0xf]
    %v67 = vld [vmem:[#allocation5 + $0x20] sm:$0xf]
    %v68 = vld [vmem:[#allocation5 + $0x24] sm:$0xf]
    %v69 = vld [vmem:[#allocation5 + $0x28] sm:$0xf]
    %v70 = vld [vmem:[#allocation5 + $0x2c] sm:$0xf]
    %v71 = vld [vmem:[#allocation5 + $0x30] sm:$0xf]
    %v72 = vld [vmem:[#allocation5 + $0x34] sm:$0xf]
    %v73 = vld [vmem:[#allocation5 + $0x38] sm:$0xf]
    %v74 = vld [vmem:[#allocation5 + $0x3c] sm:$0xf]
    %v75 = vld [vmem:[#allocation5 + $0x40] sm:$0xf]
    %v76 = vld [vmem:[#allocation5 + $0x44] sm:$0xf]
    %v77 = vld [vmem:[#allocation5 + $0x48] sm:$0xf]
    %v78 = vld [vmem:[#allocation5 + $0x4c] sm:$0xf]
    %v79 = vld [vmem:[#allocation5 + $0x50] sm:$0xf]
    %v80 = vld [vmem:[#allocation5 + $0x54] sm:$0xf]
    %v81 = vld [vmem:[#allocation5 + $0x58] sm:$0xf]
    %v82 = vld [vmem:[#allocation5 + $0x5c] sm:$0xf]
    %v83 = vld [vmem:[#allocation5 + $0x60] sm:$0xf]
    %v84 = vld [vmem:[#allocation5 + $0x64] sm:$0xf]
    %v85 = vld [vmem:[#allocation5 + $0x68] sm:$0xf]
    %v86 = vld [vmem:[#allocation5 + $0x6c] sm:$0xf]
    %v87 = vld [vmem:[#allocation5 + $0x70] sm:$0xf]
    %v88 = vld [vmem:[#allocation5 + $0x74] sm:$0xf]
    %v89 = vld [vmem:[#allocation5 + $0x78] sm:$0xf]
    %v90 = vld [vmem:[#allocation5 + $0x7c] sm:$0xf]
    %v91 = vld [vmem:[#allocation5 + $0x80] sm:$0xf]
    %v92 = vld [vmem:[#allocation5 + $0x84] sm:$0xf]
    %v93 = vld [vmem:[#allocation5 + $0x88] sm:$0xf]
    %v94 = vld [vmem:[#allocation5 + $0x8c] sm:$0xf]
    %v95 = vld [vmem:[#allocation5 + $0x90] sm:$0xf]
    %v96 = vld [vmem:[#allocation5 + $0x94] sm:$0xf]
    %v97 = vld [vmem:[#allocation5 + $0x98] sm:$0xf]
    %v98 = vld [vmem:[#allocation5 + $0x9c] sm:$0xf]
    %v99 = vld [vmem:[#allocation5 + $0xa0] sm:$0xf]
    %v100 = vld [vmem:[#allocation5 + $0xa4] sm:$0xf]
    %v101 = vld [vmem:[#allocation5 + $0xa8] sm:$0xf]
    %v102 = vld [vmem:[#allocation5 + $0xac] sm:$0xf]
    %v103 = vld [vmem:[#allocation5 + $0xb0] sm:$0xf]
    %v104 = vld [vmem:[#allocation5 + $0xb4] sm:$0xf]
    %v105 = vld [vmem:[#allocation5 + $0xb8] sm:$0xf]
    %v106 = vld [vmem:[#allocation5 + $0xbc] sm:$0xf]
    %v107 = vld [vmem:[#allocation7] sm:$0x1]
    %v108 = vld [vmem:[#allocation7 + $0x1] sm:$0x1]
    %v109 = vld [vmem:[#allocation7 + $0x2] sm:$0x1]
    %v110 = vperm.slane %v107, 0
    %v127 = vunpack.c.l.b16 %v59
    %v128 = vunpack.c.l.b16 %v60
    %v129 = vunpack.c.l.b16 %v61
    %v130 = vunpack.c.l.b16 %v62
    %v131 = vunpack.c.l.b16 %v63
    %v132 = vunpack.c.l.b16 %v64
    %v133 = vunpack.c.l.b16 %v65
    %v134 = vunpack.c.l.b16 %v66
    %v135 = vunpack.c.l.b16 %v67
    %v136 = vunpack.c.l.b16 %v68
    %v137 = vunpack.c.l.b16 %v69
    %v138 = vunpack.c.l.b16 %v70
    %v139 = vunpack.c.l.b16 %v71
    %v140 = vunpack.c.l.b16 %v72
    %v141 = vunpack.c.l.b16 %v73
    %v142 = vunpack.c.l.b16 %v74
    %v143 = vpack.c.b16 %v128, %v127
    %v144 = vpack.c.b16 %v130, %v129
    %v145 = vpack.c.b16 %v132, %v131
    %v146 = vpack.c.b16 %v134, %v133
    %v147 = vpack.c.b16 %v136, %v135
    %v148 = vpack.c.b16 %v138, %v137
    %v149 = vpack.c.b16 %v140, %v139
    %v150 = vpack.c.b16 %v142, %v141
    %159 = vmatpush.bf16.msra.mxu0 %v150
    %160 = vmatpush.bf16.msra.mxu0 %v149
    %161 = vmatpush.bf16.msra.mxu0 %v148
    %162 = vmatpush.bf16.msra.mxu0 %v147
    %163 = vmatpush.bf16.msra.mxu0 %v146
    %164 = vmatpush.bf16.msra.mxu0 %v145
    %165 = vmatpush.bf16.msra.mxu0 %v144
    %166 = vmatpush.bf16.msra.mxu0 %v143
    %167 = vmatmul.bf16.gmra.mxu0 %v58
    %v168 = vpop.f32.mrf.mxu0
    %v169 = vadd.f32 %v110, %v168
    %v170 = vpop.f32.mrf.mxu0
    %171 = vdwg.mxu0
    %v172 = vmax.f32 %v169, 0.0
    %v173 = vpack.c.bf16 %v172, %v172
    %v174 = vperm.slane %v108, 0
    %v191 = vunpack.c.l.b16 %v75
    %v192 = vunpack.c.l.b16 %v76
    %v193 = vunpack.c.l.b16 %v77
    %v194 = vunpack.c.l.b16 %v78
    %v195 = vunpack.c.l.b16 %v79
    %v196 = vunpack.c.l.b16 %v80
    %v197 = vunpack.c.l.b16 %v81
    %v198 = vunpack.c.l.b16 %v82
    %v199 = vunpack.c.l.b16 %v83
    %v200 = vunpack.c.l.b16 %v84
    %v201 = vunpack.c.l.b16 %v85
    %v202 = vunpack.c.l.b16 %v86
    %v203 = vunpack.c.l.b16 %v87
    %v204 = vunpack.c.l.b16 %v88
    %v205 = vunpack.c.l.b16 %v89
    %v206 = vunpack.c.l.b16 %v90
    %v207 = vpack.c.b16 %v192, %v191
    %v208 = vpack.c.b16 %v194, %v193
    %v209 = vpack.c.b16 %v196, %v195
    %v210 = vpack.c.b16 %v198, %v197
    %v211 = vpack.c.b16 %v200, %v199
    %v212 = vpack.c.b16 %v202, %v201
    %v213 = vpack.c.b16 %v204, %v203
    %v214 = vpack.c.b16 %v206, %v205
    %223 = vmatpush.bf16.msra.mxu0 %v214
    %224 = vmatpush.bf16.msra.mxu0 %v213
    %225 = vmatpush.bf16.msra.mxu0 %v212
    %226 = vmatpush.bf16.msra.mxu0 %v211
    %227 = vmatpush.bf16.msra.mxu0 %v210
    %228 = vmatpush.bf16.msra.mxu0 %v209
    %229 = vmatpush.bf16.msra.mxu0 %v208
    %230 = vmatpush.bf16.msra.mxu0 %v207
    %231 = vmatmul.bf16.gmra.mxu0 %v173
    %v232 = vpop.f32.mrf.mxu0
    %v233 = vadd.f32 %v174, %v232
    %v234 = vpop.f32.mrf.mxu0
    %235 = vdwg.mxu0
    %v236 = vmax.f32 %v233, 0.0
    %v237 = vpack.c.bf16 %v236, %v236
    %v238 = vperm.slane %v109, 0
    %v255 = vunpack.c.l.b16 %v91
    %v256 = vunpack.c.l.b16 %v92
    %v257 = vunpack.c.l.b16 %v93
    %v258 = vunpack.c.l.b16 %v94
    %v259 = vunpack.c.l.b16 %v95
    %v260 = vunpack.c.l.b16 %v96
    %v261 = vunpack.c.l.b16 %v97
    %v262 = vunpack.c.l.b16 %v98
    %v263 = vunpack.c.l.b16 %v99
    %v264 = vunpack.c.l.b16 %v100
    %v265 = vunpack.c.l.b16 %v101
    %v266 = vunpack.c.l.b16 %v102
    %v267 = vunpack.c.l.b16 %v103
    %v268 = vunpack.c.l.b16 %v104
    %v269 = vunpack.c.l.b16 %v105
    %v270 = vunpack.c.l.b16 %v106
    %v271 = vpack.c.b16 %v256, %v255
    %v272 = vpack.c.b16 %v258, %v257
    %v273 = vpack.c.b16 %v260, %v259
    %v274 = vpack.c.b16 %v262, %v261
    %v275 = vpack.c.b16 %v264, %v263
    %v276 = vpack.c.b16 %v266, %v265
    %v277 = vpack.c.b16 %v268, %v267
    %v278 = vpack.c.b16 %v270, %v269
    %287 = vmatpush.bf16.msra.mxu0 %v278
    %288 = vmatpush.bf16.msra.mxu0 %v277
    %289 = vmatpush.bf16.msra.mxu0 %v276
    %290 = vmatpush.bf16.msra.mxu0 %v275
    %291 = vmatpush.bf16.msra.mxu0 %v274
    %292 = vmatpush.bf16.msra.mxu0 %v273
    %293 = vmatpush.bf16.msra.mxu0 %v272
    %294 = vmatpush.bf16.msra.mxu0 %v271
    %295 = vmatmul.bf16.gmra.mxu0 %v237
    %v296 = vpop.f32.mrf.mxu0
    %v297 = vadd.f32 %v238, %v296
    %v298 = vpop.f32.mrf.mxu0
    %299 = vdwg.mxu0
    %300 = vmax.xlane.f32.xlu0 %v297
    %v301 = vpop.xlane.xlu0 %300
    %v302 = vsub.f32 %v297, %v301
    %v303 = vmul.f32 %v302, 1.442695
    %v304 = vpow.pop %v303
    %305 = vadd.xlane.f32.xlu0 %v304
    %v306 = vpop.xlane.xlu0 %305
    %v307 = vrcp.pop %v306
    %v308 = vmul.f32 %v306, %v307
    %v309 = vsub.f32 1.0, %v308
    %v310 = vmul.f32 %v307, %v309
    %v311 = vadd.f32 %v307, %v310
    %vm312 = vweird.f32 %v306
    %vm313 = vweird.f32 %v307
    %vm314 = vmor %vm312, %vm313
    %v315 = vsel %vm314, %v307, %v311
    %v316 = vand.u32 2147483647, %v306
    %vm317 = vcmp.eq.f32.partialorder %v316, 8.507059e+37
    %v318 = vand.u32 %v306, 2147483648
    %v319 = vor.u32 1.1754944e-38, %v318
    %v320 = vsel %vm317, %v319, %v315
    %v321 = vmul.f32 %v304, %v320
    %322 = vst [vmem:[#allocation8] sm:$0xff] %v321
    // Predicated region
    $region26: #{tpu_custom_call.1} parent=1 // pred_check
      _
    $region27: #{tpu_custom_call.1} parent=1 // pred_check_branch
      %324 = sbr.rel (0) target = $region29
    $region28: #{tpu_custom_call.1} parent=1 // pred_region
      %326 = vsyncadd [#allocation4], 0
      %s328 = sshll.u32 [#allocation8], 4
      %s329 = int_to_ptr.vmem [resolvable:$true] %s328
      %s330 = sshll.u32 %s3, 4
      %s331 = int_to_ptr.hbm [resolvable:$true] %s330
      %333 = dma.vmem_to_hbm [thread:$0]  %s329, 128, %s331, [#allocation4]
    $region29: #{tpu_custom_call.1} parent=1 // pred_fallthru
      _
    // Predicated region
    $region30: #{tpu_custom_call.1} parent=1 // pred_check
      _
    $region31: #{tpu_custom_call.1} parent=1 // pred_check_branch
      %335 = sbr.rel (0) target = $region33
    $region32: #{tpu_custom_call.1} parent=1 // pred_region
      %337 = dma.done [#allocation4], 128
    $region33: #{tpu_custom_call.1} parent=1 // pred_fallthru
      _
    %338 = vsyncpa [#allocation3], 1
    %339 = vsyncpa [#allocation6], 1
    %340 = vsyncpa [#allocation4], 1

</llo_original>
